<compile_context>
chip_gen: v5e
topology: v5e:2x2
jax: 0.10.0
libtpu: 0.0.40
codegen_flags: <defaults>
</compile_context>

<pallas_src>
import functools

import jax
import jax.numpy as jnp
from jax.experimental import pallas as pl
from jax.experimental.pallas import tpu as pltpu


N_EMBEDDINGS = 512
EMBEDDING_DIM = 32
COMMITMENT_COST = 0.25

# Row tile (sweepable 512..2048). At 1024 the (TN, M) f32 intermediates
# (scores + one-hot) are ~4 MB, comfortably inside the 32 MiB scoped VMEM on
# v5e/v6e/v7x while amortizing the ~0.35 us per-step overhead.
_MAX_ROW_TILE = 1024


def _round_up(a, b):
    return (a + b - 1) // b * b


def _vq_kernel(x_ref, emb_ref, embt_ref, half_esq_ref, q_ref, counts_ref, *,
               n_valid_rows):
    """One grid step handles a (TN, D) row tile of the flattened input.

    x_ref:        (TN, D) f32  input rows (tail rows may be zero padding)
    emb_ref:      (M,  D) f32  codebook (resident; constant index_map)
    embt_ref:     (D,  M) f32  pre-transposed codebook (hoisted to wrapper)
    half_esq_ref: (1,  M) f32  0.5 * ||e_m||^2 (hoisted to wrapper)
    q_ref:        (TN, D) f32  nearest codebook row per input row
    counts_ref:   (1,  M) f32  per-tile code-usage counts (summed in JAX)
    """
    i = pl.program_id(0)
    tn = x_ref.shape[0]

    x = x_ref[...]                                                      # (TN, D)

    # argmin_m ||x - e_m||^2 == argmin_m (0.5*||e_m||^2 - x.e_m); ||x||^2 is
    # constant per row so it is dropped, and 0.5*||e||^2 comes precomputed.
    xe = jnp.dot(x, embt_ref[...], preferred_element_type=jnp.float32)  # MXU (TN, M)
    score = half_esq_ref[...] - xe                                      # (TN, M)
    idx = jnp.argmin(score, axis=-1)                                    # (TN,)  XLU

    # One-hot encodings; codebook row gather as an MXU matmul (exact gather:
    # exactly one 1.0 per row, ties resolved to the lowest index by argmin).
    lane = jax.lax.broadcasted_iota(jnp.int32, score.shape, 1)          # (TN, M)
    onehot = (lane == idx[:, None]).astype(jnp.float32)                 # (TN, M)
    q_ref[...] = jnp.dot(onehot, emb_ref[...],
                         preferred_element_type=jnp.float32)            # (TN, D)

    # Per-tile counts: validity mask kills padded tail rows; the row reduction
    # runs on the MXU ((1, TN) @ (TN, M)) instead of an XLU sublane reduce.
    # No cross-step accumulation -> grid axis stays "parallel".
    row_ids = jax.lax.broadcasted_iota(jnp.int32, (1, tn), 1) + i * tn  # (1, TN)
    valid = (row_ids < n_valid_rows).astype(jnp.float32)                # (1, TN)
    counts_ref[...] = jnp.dot(valid, onehot,
                              preferred_element_type=jnp.float32)       # (1, M)


def vq_embedding_ema_forward(x, embedding, commitment_cost=COMMITMENT_COST):
    """Eval-mode forward of VQEmbeddingEMA.

    x:         (B, H, W, D) float   (channels-last; D == embedding_dim)
    embedding: (M, D)       float
    Returns (quantized, commitment_loss, codebook_loss, perplexity).
    """
    M, D = embedding.shape
    x = x.astype(jnp.float32)
    embedding = embedding.astype(jnp.float32)

    x_flat = x.reshape(-1, D)
    N = x_flat.shape[0]

    # Large row tile for per-step-overhead amortization / MXU fill; padded
    # grid (cdiv-style) with in-kernel tail masking for non-multiple N.
    TN = min(_MAX_ROW_TILE, _round_up(N, 8))
    N_pad = _round_up(N, TN)
    x_pad = x_flat if N_pad == N else jnp.pad(x_flat, ((0, N_pad - N), (0, 0)))
    n_tiles = N_pad // TN

    # Codebook-side precompute hoisted out of the kernel: no per-step XLU
    # transpose and no per-step ||e||^2 / ||x||^2 recompute.
    emb_t = embedding.T                                                 # (D, M)
    half_e_sq = 0.5 * jnp.sum(embedding * embedding, axis=-1)[None, :]  # (1, M)

    kernel = functools.partial(_vq_kernel, n_valid_rows=N)

    q_pad, counts_tiles = pl.pallas_call(
        kernel,
        out_shape=(
            jax.ShapeDtypeStruct((N_pad, D), jnp.float32),
            jax.ShapeDtypeStruct((n_tiles, 1, M), jnp.float32),
        ),
        grid_spec=pltpu.PrefetchScalarGridSpec(
            num_scalar_prefetch=0,
            grid=(n_tiles,),
            in_specs=[
                pl.BlockSpec((TN, D), lambda i: (i, 0)),      # x row tile
                pl.BlockSpec((M, D), lambda i: (0, 0)),       # codebook (resident)
                pl.BlockSpec((D, M), lambda i: (0, 0)),       # codebook^T (resident)
                pl.BlockSpec((1, M), lambda i: (0, 0)),       # 0.5*||e||^2 (resident)
            ],
            out_specs=[
                pl.BlockSpec((TN, D), lambda i: (i, 0)),      # quantized rows
                pl.BlockSpec((None, 1, M), lambda i: (i, 0, 0)),  # per-tile counts
            ],
        ),
        compiler_params=pltpu.CompilerParams(
            # No cross-iteration accumulator -> row axis is fully parallel
            # (megacore-shardable on v7x; no-op on single-TC v5e/v6e).
            dimension_semantics=("parallel",),
            vmem_limit_bytes=32 * 1024 * 1024,
        ),
    )(x_pad, embedding, emb_t, half_e_sq)

    quantized = jax.lax.stop_gradient(q_pad[:N].reshape(x.shape))

    # Losses with the reference's detach placement (embedding is a buffer, so
    # `quantized` carries no gradient; x.detach() feeds the codebook loss).
    codebook_loss = jnp.mean((jax.lax.stop_gradient(x) - quantized) ** 2)
    e_latent_loss = jnp.mean((x - quantized) ** 2)
    commitment_loss = commitment_cost * e_latent_loss

    # Straight-through estimator: forward value equals `quantized`.
    quantized_st = x + jax.lax.stop_gradient(quantized - x)

    # Per-tile counts -> global counts; mean of one-hot encodings over rows.
    counts = jnp.sum(counts_tiles, axis=0)[0]                 # (M,)
    avg_probs = counts / N
    perplexity = jnp.exp(-jnp.sum(avg_probs * jnp.log(avg_probs + 1e-10)))

    return quantized_st, commitment_loss, codebook_loss, perplexity


if __name__ == "__main__":
    key = jax.random.PRNGKey(0)
    k_emb, k_x = jax.random.split(key)

    # Deterministic parameter init mirroring torch's uniform_(-1/M, 1/M).
    init_bound = 1.0 / N_EMBEDDINGS
    embedding = jax.random.uniform(
        k_emb, (N_EMBEDDINGS, EMBEDDING_DIM),
        minval=-init_bound, maxval=init_bound, dtype=jnp.float32)

    # Small input: batch=2, spatial=8x8, embedding_dim=32 (channels-last).
    x = jax.random.normal(k_x, (2, 8, 8, EMBEDDING_DIM), dtype=jnp.float32)

    fwd = jax.jit(vq_embedding_ema_forward)
    quantized, commitment_loss, codebook_loss, perplexity = fwd(x, embedding)
    jax.block_until_ready((quantized, commitment_loss, codebook_loss,
                           perplexity))

    assert quantized.shape == x.shape
    assert commitment_loss.shape == ()
    assert codebook_loss.shape == ()
    assert perplexity.shape == ()
    assert bool(jnp.isfinite(commitment_loss))
    assert bool(jnp.isfinite(codebook_loss))
    assert bool(jnp.isfinite(perplexity))

    print("KERNEL_OK")
</pallas_src>

<mosaic_0001>
module attributes {stable_mosaic.version = 11 : i64} {
  func.func @_vq_kernel(%arg0: i32, %arg1: memref<128x32xf32, #tpu.memory_space<vmem>>, %arg2: memref<512x32xf32, #tpu.memory_space<vmem>>, %arg3: memref<32x512xf32, #tpu.memory_space<vmem>>, %arg4: memref<1x512xf32, #tpu.memory_space<vmem>>, %arg5: memref<128x32xf32, #tpu.memory_space<vmem>>, %arg6: memref<1x1x512xf32, #tpu.memory_space<vmem>>) attributes {dimension_semantics = [#tpu.dimension_semantics<parallel>], iteration_bounds = array<i64: 1>, scalar_prefetch = 0 : i64, scratch_operands = 0 : i64, tpu.core_type = #tpu.core_type<tc>, window_params = [{transform_indices = @transform_0, window_bounds = array<i64: 128, 32>}, {pipeline_mode = #tpu.pipeline_mode<synchronous>, transform_indices = @transform_1, window_bounds = array<i64: 512, 32>}, {pipeline_mode = #tpu.pipeline_mode<synchronous>, transform_indices = @transform_2, window_bounds = array<i64: 32, 512>}, {pipeline_mode = #tpu.pipeline_mode<synchronous>, transform_indices = @transform_3, window_bounds = array<i64: 1, 512>}, {transform_indices = @transform_4, window_bounds = array<i64: 128, 32>}, {transform_indices = @transform_5, window_bounds = array<i64: 1, 1, 512>}]} {
    %c0 = arith.constant 0 : index
    %c0_0 = arith.constant 0 : index
    %0 = vector.load %arg1[%c0, %c0_0] : memref<128x32xf32, #tpu.memory_space<vmem>>, vector<128x32xf32>
    %c0_1 = arith.constant 0 : index
    %c0_2 = arith.constant 0 : index
    %1 = vector.load %arg3[%c0_1, %c0_2] : memref<32x512xf32, #tpu.memory_space<vmem>>, vector<32x512xf32>
    %cst = arith.constant dense<0.000000e+00> : vector<128x512xf32>
    %2 = tpu.matmul %0, %1, %cst {dimension_numbers = #tpu.dot_dimension_numbers<[1], [0], [0], [1], [0, 0, 1, 1], [], []>} : vector<128x32xf32>, vector<32x512xf32>, vector<128x512xf32> -> vector<128x512xf32>
    %c0_3 = arith.constant 0 : index
    %c0_4 = arith.constant 0 : index
    %3 = vector.load %arg4[%c0_3, %c0_4] : memref<1x512xf32, #tpu.memory_space<vmem>>, vector<1x512xf32>
    %4 = vector.broadcast %3 : vector<1x512xf32> to vector<128x512xf32>
    %5 = arith.subf %4, %2 : vector<128x512xf32>
    %6 = tpu.reduce_index %5 {axis = 1 : i32, kind = #tpu.reduction_kind<arg_min>} : vector<128x512xf32> -> vector<128xi32>
    %7 = tpu.iota {dimensions = array<i32: 1>} : vector<128x512xi32>
    %8 = vector.shape_cast %6 : vector<128xi32> to vector<128x1xi32>
    %9 = vector.broadcast %8 : vector<128x1xi32> to vector<128x512xi32>
    %10 = arith.cmpi eq, %7, %9 : vector<128x512xi32>
    %11 = arith.extui %10 : vector<128x512xi1> to vector<128x512xi32>
    %12 = arith.sitofp %11 : vector<128x512xi32> to vector<128x512xf32>
    %c0_5 = arith.constant 0 : index
    %c0_6 = arith.constant 0 : index
    %13 = vector.load %arg2[%c0_5, %c0_6] : memref<512x32xf32, #tpu.memory_space<vmem>>, vector<512x32xf32>
    %cst_7 = arith.constant dense<0.000000e+00> : vector<128x32xf32>
    %14 = tpu.matmul %12, %13, %cst_7 {dimension_numbers = #tpu.dot_dimension_numbers<[1], [0], [0], [1], [0, 0, 1, 1], [], []>} : vector<128x512xf32>, vector<512x32xf32>, vector<128x32xf32> -> vector<128x32xf32>
    %c0_8 = arith.constant 0 : index
    %c0_9 = arith.constant 0 : index
    %15 = vector.load %arg5[%c0_8, %c0_9] : memref<128x32xf32, #tpu.memory_space<vmem>>, vector<128x32xf32>
    tpu.vector_store %arg5[%c0_8, %c0_9], %14 {strides = array<i32>} : memref<128x32xf32, #tpu.memory_space<vmem>>, vector<128x32xf32>,
    %16 = tpu.iota {dimensions = array<i32: 1>} : vector<1x128xi32>
    %c128_i32 = arith.constant 128 : i32
    %17 = arith.muli %arg0, %c128_i32 : i32
    %18 = vector.broadcast %17 : i32 to vector<1x128xi32>
    %19 = arith.addi %16, %18 : vector<1x128xi32>
    %c128_i32_10 = arith.constant 128 : i32
    %20 = vector.broadcast %c128_i32_10 : i32 to vector<1x128xi32>
    %21 = arith.cmpi slt, %19, %20 : vector<1x128xi32>
    %22 = arith.extui %21 : vector<1x128xi1> to vector<1x128xi32>
    %23 = arith.sitofp %22 : vector<1x128xi32> to vector<1x128xf32>
    %cst_11 = arith.constant dense<0.000000e+00> : vector<1x512xf32>
    %24 = tpu.matmul %23, %12, %cst_11 {dimension_numbers = #tpu.dot_dimension_numbers<[1], [0], [0], [1], [0, 0, 1, 1], [], []>} : vector<1x128xf32>, vector<128x512xf32>, vector<1x512xf32> -> vector<1x512xf32>
    %c0_12 = arith.constant 0 : index
    %c0_13 = arith.constant 0 : index
    %c0_14 = arith.constant 0 : index
    %25 = vector.load %arg6[%c0_12, %c0_13, %c0_14] : memref<1x1x512xf32, #tpu.memory_space<vmem>>, vector<1x1x512xf32>
    %26 = vector.shape_cast %25 : vector<1x1x512xf32> to vector<1x512xf32>
    %27 = vector.shape_cast %24 : vector<1x512xf32> to vector<1x1x512xf32>
    tpu.vector_store %arg6[%c0_12, %c0_13, %c0_14], %27 {strides = array<i32>} : memref<1x1x512xf32, #tpu.memory_space<vmem>>, vector<1x1x512xf32>,
    return
  }
  func.func @transform_0(%arg0: i32) -> (i32, i32) {
    %c0_i32 = arith.constant 0 : i32
    %c0_i32_0 = arith.constant 0 : i32
    return %arg0, %c0_i32 : i32, i32
  }
  func.func @transform_1(%arg0: i32) -> (i32, i32) {
    %c0_i32 = arith.constant 0 : i32
    %c0_i32_0 = arith.constant 0 : i32
    %c0_i32_1 = arith.constant 0 : i32
    return %c0_i32, %c0_i32_0 : i32, i32
  }
  func.func @transform_2(%arg0: i32) -> (i32, i32) {
    %c0_i32 = arith.constant 0 : i32
    %c0_i32_0 = arith.constant 0 : i32
    %c0_i32_1 = arith.constant 0 : i32
    return %c0_i32, %c0_i32_0 : i32, i32
  }
  func.func @transform_3(%arg0: i32) -> (i32, i32) {
    %c0_i32 = arith.constant 0 : i32
    %c0_i32_0 = arith.constant 0 : i32
    %c0_i32_1 = arith.constant 0 : i32
    return %c0_i32, %c0_i32_0 : i32, i32
  }
  func.func @transform_4(%arg0: i32) -> (i32, i32) {
    %c0_i32 = arith.constant 0 : i32
    %c0_i32_0 = arith.constant 0 : i32
    return %arg0, %c0_i32 : i32, i32
  }
  func.func @transform_5(%arg0: i32) -> (i32, i32, i32) {
    %c0_i32 = arith.constant 0 : i32
    %c0_i32_0 = arith.constant 0 : i32
    %c0_i32_1 = arith.constant 0 : i32
    return %arg0, %c0_i32, %c0_i32_0 : i32, i32, i32
  }
}

</mosaic_0001>

<llo_original>
// kernel: vq_embedding_ema_forward.1
$region0: #{vq_embedding_ema_forward.1}
  #allocation0 [shape = 'u32[]', space=smem, size = 0x4, offset = 0x4, fixed_abs, tag = 'smem constant byte address 0x4 - core index']
  #allocation1 [shape = 'u32[72,128]{1,0:T(1,128)}', space=vmem, size = 0x9000, scoped, tag = 'internal scratch']
  %s0 = inlined_call_operand.vmem [shape: f32[128,32], index: 0, kind: input, shape index: {}]
  %s1 = inlined_call_operand.vmem [shape: f32[512,32], index: 1, kind: input, shape index: {}]
  %s2 = inlined_call_operand.vmem [shape: f32[32,512], index: 2, kind: input, shape index: {}]
  %s3 = inlined_call_operand.vmem [shape: f32[1,512], index: 3, kind: input, shape index: {}]
  %s4 = inlined_call_operand.vmem [shape: f32[128,32], index: 4, kind: output, shape index: {0}]
  %s5 = inlined_call_operand.vmem [shape: f32[1,1,512], index: 5, kind: output, shape index: {1}]
  %6 = xla_tuple %s4, %s5
  %s7 = sld [smem:[#allocation0]]
  $region34: #{vq_embedding_ema_forward.1} parent=0
    _
  %s9 = ssub.s32 1, %s7
  %s10 = scalar_select 0, %s9, %s7
  // Predicated region
  $region2: #{vq_embedding_ema_forward.1} parent=0 // pred_check
    _
  $region3: #{vq_embedding_ema_forward.1} parent=0 // pred_check_branch
    %12 = sbr.rel (0) target = $region5
  $region4: #{vq_embedding_ema_forward.1} parent=0 // pred_region
    _
  $region5: #{vq_embedding_ema_forward.1} parent=0 // pred_fallthru
    _
  // Predicated region
  $region6: #{vq_embedding_ema_forward.1} parent=0 // pred_check
    _
  $region7: #{vq_embedding_ema_forward.1} parent=0 // pred_check_branch
    %14 = sbr.rel (0) target = $region9
  $region8: #{vq_embedding_ema_forward.1} parent=0 // pred_region
    _
  $region9: #{vq_embedding_ema_forward.1} parent=0 // pred_fallthru
    _
  // Predicated region
  $region10: #{vq_embedding_ema_forward.1} parent=0 // pred_check
    _
  $region11: #{vq_embedding_ema_forward.1} parent=0 // pred_check_branch
    %16 = sbr.rel (0) target = $region13
  $region12: #{vq_embedding_ema_forward.1} parent=0 // pred_region
    _
  $region13: #{vq_embedding_ema_forward.1} parent=0 // pred_fallthru
    _
  // Predicated region
  $region14: #{vq_embedding_ema_forward.1} parent=0 // pred_check
    _
  $region15: #{vq_embedding_ema_forward.1} parent=0 // pred_check_branch
    %18 = sbr.rel (0) target = $region17
  $region16: #{vq_embedding_ema_forward.1} parent=0 // pred_region
    _
  $region17: #{vq_embedding_ema_forward.1} parent=0 // pred_fallthru
    _
  %v19 = vld [vmem:[%s0] sm:$0xff]
  %v20 = vld [vmem:[%s0 + $0x8] sm:$0xff]
  %v21 = vld [vmem:[%s0 + $0x10] sm:$0xff]
  %v22 = vld [vmem:[%s0 + $0x18] sm:$0xff]
  %v23 = vld [vmem:[%s0 + $0x20] sm:$0xff]
  %v24 = vld [vmem:[%s0 + $0x28] sm:$0xff]
  %v25 = vld [vmem:[%s0 + $0x30] sm:$0xff]
  %v26 = vld [vmem:[%s0 + $0x38] sm:$0xff]
  %v27 = vld [vmem:[%s0 + $0x40] sm:$0xff]
  %v28 = vld [vmem:[%s0 + $0x48] sm:$0xff]
  %v29 = vld [vmem:[%s0 + $0x50] sm:$0xff]
  %v30 = vld [vmem:[%s0 + $0x58] sm:$0xff]
  %v31 = vld [vmem:[%s0 + $0x60] sm:$0xff]
  %v32 = vld [vmem:[%s0 + $0x68] sm:$0xff]
  %v33 = vld [vmem:[%s0 + $0x70] sm:$0xff]
  %v34 = vld [vmem:[%s0 + $0x78] sm:$0xff]
  %v35 = vld [vmem:[%s2] sm:$0xff]
  %v36 = vld [vmem:[%s2 + $0x8] sm:$0xff]
  %v37 = vld [vmem:[%s2 + $0x10] sm:$0xff]
  %v38 = vld [vmem:[%s2 + $0x18] sm:$0xff]
  %v39 = vld [vmem:[%s2 + $0x20] sm:$0xff]
  %v40 = vld [vmem:[%s2 + $0x28] sm:$0xff]
  %v41 = vld [vmem:[%s2 + $0x30] sm:$0xff]
  %v42 = vld [vmem:[%s2 + $0x38] sm:$0xff]
  %v43 = vld [vmem:[%s2 + $0x40] sm:$0xff]
  %v44 = vld [vmem:[%s2 + $0x48] sm:$0xff]
  %v45 = vld [vmem:[%s2 + $0x50] sm:$0xff]
  %v46 = vld [vmem:[%s2 + $0x58] sm:$0xff]
  %v47 = vld [vmem:[%s2 + $0x60] sm:$0xff]
  %v48 = vld [vmem:[%s2 + $0x68] sm:$0xff]
  %v49 = vld [vmem:[%s2 + $0x70] sm:$0xff]
  %v50 = vld [vmem:[%s2 + $0x78] sm:$0xff]
  %vm51 = vcmask 261120
  %v53 = vsel %vm51, %v19, 0
  %v56 = vsel %vm51, %v20, 0
  %v59 = vsel %vm51, %v21, 0
  %v62 = vsel %vm51, %v22, 0
  %v65 = vsel %vm51, %v23, 0
  %v68 = vsel %vm51, %v24, 0
  %v71 = vsel %vm51, %v25, 0
  %v74 = vsel %vm51, %v26, 0
  %v77 = vsel %vm51, %v27, 0
  %v80 = vsel %vm51, %v28, 0
  %v83 = vsel %vm51, %v29, 0
  %v86 = vsel %vm51, %v30, 0
  %v89 = vsel %vm51, %v31, 0
  %v92 = vsel %vm51, %v32, 0
  %v95 = vsel %vm51, %v33, 0
  %v98 = vsel %vm51, %v34, 0
  %100 = vmatpush.msra.mxu0 0.0
  %101 = vmatpush.msra.mxu0 0.0
  %102 = vmatpush.msra.mxu0 0.0
  %103 = vmatpush.msra.mxu0 0.0
  %104 = vmatpush.msra.mxu0 0.0
  %105 = vmatpush.msra.mxu0 0.0
  %106 = vmatpush.msra.mxu0 0.0
  %107 = vmatpush.msra.mxu0 0.0
  %108 = vmatpush.msra.mxu0 0.0
  %109 = vmatpush.msra.mxu0 0.0
  %110 = vmatpush.msra.mxu0 0.0
  %111 = vmatpush.msra.mxu0 0.0
  %112 = vmatpush.msra.mxu0 %v47
  %113 = vmatpush.msra.mxu0 %v43
  %114 = vmatpush.msra.mxu0 %v39
  %115 = vmatpush.msra.mxu0 %v35
  %116 = vmatmul.f32.gmra.mxu0 %v53
  %v117 = vpop.f32.mrf.mxu0
  %v118 = vadd.f32 0.0, %v117
  %119 = vmatmul.f32.gmra.mxu0 %v56
  %v120 = vpop.f32.mrf.mxu0
  %v121 = vadd.f32 0.0, %v120
  %122 = vmatmul.f32.gmra.mxu0 %v59
  %v123 = vpop.f32.mrf.mxu0
  %v124 = vadd.f32 0.0, %v123
  %125 = vmatmul.f32.gmra.mxu0 %v62
  %v126 = vpop.f32.mrf.mxu0
  %v127 = vadd.f32 0.0, %v126
  %128 = vmatmul.f32.gmra.mxu0 %v65
  %v129 = vpop.f32.mrf.mxu0
  %v130 = vadd.f32 0.0, %v129
  %131 = vmatmul.f32.gmra.mxu0 %v68
  %v132 = vpop.f32.mrf.mxu0
  %v133 = vadd.f32 0.0, %v132
  %134 = vmatmul.f32.gmra.mxu0 %v71
  %v135 = vpop.f32.mrf.mxu0
  %v136 = vadd.f32 0.0, %v135
  %137 = vmatmul.f32.gmra.mxu0 %v74
  %v138 = vpop.f32.mrf.mxu0
  %v139 = vadd.f32 0.0, %v138
  %140 = vmatmul.f32.gmra.mxu0 %v77
  %v141 = vpop.f32.mrf.mxu0
  %v142 = vadd.f32 0.0, %v141
  %143 = vmatmul.f32.gmra.mxu0 %v80
  %v144 = vpop.f32.mrf.mxu0
  %v145 = vadd.f32 0.0, %v144
  %146 = vmatmul.f32.gmra.mxu0 %v83
  %v147 = vpop.f32.mrf.mxu0
  %v148 = vadd.f32 0.0, %v147
  %149 = vmatmul.f32.gmra.mxu0 %v86
  %v150 = vpop.f32.mrf.mxu0
  %v151 = vadd.f32 0.0, %v150
  %152 = vmatmul.f32.gmra.mxu0 %v89
  %v153 = vpop.f32.mrf.mxu0
  %v154 = vadd.f32 0.0, %v153
  %155 = vmatmul.f32.gmra.mxu0 %v92
  %v156 = vpop.f32.mrf.mxu0
  %v157 = vadd.f32 0.0, %v156
  %158 = vmatmul.f32.gmra.mxu0 %v95
  %v159 = vpop.f32.mrf.mxu0
  %v160 = vadd.f32 0.0, %v159
  %161 = vmatmul.f32.gmra.mxu0 %v98
  %v162 = vpop.f32.mrf.mxu0
  %v163 = vadd.f32 0.0, %v162
  %164 = vdwg.mxu0
  %165 = vmatpush.msra.mxu0 0.0
  %166 = vmatpush.msra.mxu0 0.0
  %167 = vmatpush.msra.mxu0 0.0
  %168 = vmatpush.msra.mxu0 0.0
  %169 = vmatpush.msra.mxu0 0.0
  %170 = vmatpush.msra.mxu0 0.0
  %171 = vmatpush.msra.mxu0 0.0
  %172 = vmatpush.msra.mxu0 0.0
  %173 = vmatpush.msra.mxu0 0.0
  %174 = vmatpush.msra.mxu0 0.0
  %175 = vmatpush.msra.mxu0 0.0
  %176 = vmatpush.msra.mxu0 0.0
  %177 = vmatpush.msra.mxu0 %v48
  %178 = vmatpush.msra.mxu0 %v44
  %179 = vmatpush.msra.mxu0 %v40
  %180 = vmatpush.msra.mxu0 %v36
  %181 = vmatmul.f32.gmra.mxu0 %v53
  %v182 = vpop.f32.mrf.mxu0
  %v183 = vadd.f32 0.0, %v182
  %184 = vmatmul.f32.gmra.mxu0 %v56
  %v185 = vpop.f32.mrf.mxu0
  %v186 = vadd.f32 0.0, %v185
  %187 = vmatmul.f32.gmra.mxu0 %v59
  %v188 = vpop.f32.mrf.mxu0
  %v189 = vadd.f32 0.0, %v188
  %190 = vmatmul.f32.gmra.mxu0 %v62
  %v191 = vpop.f32.mrf.mxu0
  %v192 = vadd.f32 0.0, %v191
  %193 = vmatmul.f32.gmra.mxu0 %v65
  %v194 = vpop.f32.mrf.mxu0
  %v195 = vadd.f32 0.0, %v194
  %196 = vmatmul.f32.gmra.mxu0 %v68
  %v197 = vpop.f32.mrf.mxu0
  %v198 = vadd.f32 0.0, %v197
  %199 = vmatmul.f32.gmra.mxu0 %v71
  %v200 = vpop.f32.mrf.mxu0
  %v201 = vadd.f32 0.0, %v200
  %202 = vmatmul.f32.gmra.mxu0 %v74
  %v203 = vpop.f32.mrf.mxu0
  %v204 = vadd.f32 0.0, %v203
  %205 = vmatmul.f32.gmra.mxu0 %v77
  %v206 = vpop.f32.mrf.mxu0
  %v207 = vadd.f32 0.0, %v206
  %208 = vmatmul.f32.gmra.mxu0 %v80
  %v209 = vpop.f32.mrf.mxu0
  %v210 = vadd.f32 0.0, %v209
  %211 = vmatmul.f32.gmra.mxu0 %v83
  %v212 = vpop.f32.mrf.mxu0
  %v213 = vadd.f32 0.0, %v212
  %214 = vmatmul.f32.gmra.mxu0 %v86
  %v215 = vpop.f32.mrf.mxu0
  %v216 = vadd.f32 0.0, %v215
  %217 = vmatmul.f32.gmra.mxu0 %v89
  %v218 = vpop.f32.mrf.mxu0
  %v219 = vadd.f32 0.0, %v218
  %220 = vmatmul.f32.gmra.mxu0 %v92
  %v221 = vpop.f32.mrf.mxu0
  %v222 = vadd.f32 0.0, %v221
  %223 = vmatmul.f32.gmra.mxu0 %v95
  %v224 = vpop.f32.mrf.mxu0
  %v225 = vadd.f32 0.0, %v224
  %226 = vmatmul.f32.gmra.mxu0 %v98
  %v227 = vpop.f32.mrf.mxu0
  %v228 = vadd.f32 0.0, %v227
  %229 = vdwg.mxu0
  %230 = vmatpush.msra.mxu0 0.0
  %231 = vmatpush.msra.mxu0 0.0
  %232 = vmatpush.msra.mxu0 0.0
  %233 = vmatpush.msra.mxu0 0.0
  %234 = vmatpush.msra.mxu0 0.0
  %235 = vmatpush.msra.mxu0 0.0
  %236 = vmatpush.msra.mxu0 0.0
  %237 = vmatpush.msra.mxu0 0.0
  %238 = vmatpush.msra.mxu0 0.0
  %239 = vmatpush.msra.mxu0 0.0
  %240 = vmatpush.msra.mxu0 0.0
  %241 = vmatpush.msra.mxu0 0.0
  %242 = vmatpush.msra.mxu0 %v49
  %243 = vmatpush.msra.mxu0 %v45
  %244 = vmatpush.msra.mxu0 %v41
  %245 = vmatpush.msra.mxu0 %v37
  %246 = vmatmul.f32.gmra.mxu0 %v53
  %v247 = vpop.f32.mrf.mxu0
  %v248 = vadd.f32 0.0, %v247
  %249 = vmatmul.f32.gmra.mxu0 %v56
  %v250 = vpop.f32.mrf.mxu0
  %v251 = vadd.f32 0.0, %v250
  %252 = vmatmul.f32.gmra.mxu0 %v59
  %v253 = vpop.f32.mrf.mxu0
  %v254 = vadd.f32 0.0, %v253
  %255 = vmatmul.f32.gmra.mxu0 %v62
  %v256 = vpop.f32.mrf.mxu0
  %v257 = vadd.f32 0.0, %v256
  %258 = vmatmul.f32.gmra.mxu0 %v65
  %v259 = vpop.f32.mrf.mxu0
  %v260 = vadd.f32 0.0, %v259
  %261 = vmatmul.f32.gmra.mxu0 %v68
  %v262 = vpop.f32.mrf.mxu0
  %v263 = vadd.f32 0.0, %v262
  %264 = vmatmul.f32.gmra.mxu0 %v71
  %v265 = vpop.f32.mrf.mxu0
  %v266 = vadd.f32 0.0, %v265
  %267 = vmatmul.f32.gmra.mxu0 %v74
  %v268 = vpop.f32.mrf.mxu0
  %v269 = vadd.f32 0.0, %v268
  %270 = vmatmul.f32.gmra.mxu0 %v77
  %v271 = vpop.f32.mrf.mxu0
  %v272 = vadd.f32 0.0, %v271
  %273 = vmatmul.f32.gmra.mxu0 %v80
  %v274 = vpop.f32.mrf.mxu0
  %v275 = vadd.f32 0.0, %v274
  %276 = vmatmul.f32.gmra.mxu0 %v83
  %v277 = vpop.f32.mrf.mxu0
  %v278 = vadd.f32 0.0, %v277
  %279 = vmatmul.f32.gmra.mxu0 %v86
  %v280 = vpop.f32.mrf.mxu0
  %v281 = vadd.f32 0.0, %v280
  %282 = vmatmul.f32.gmra.mxu0 %v89
  %v283 = vpop.f32.mrf.mxu0
  %v284 = vadd.f32 0.0, %v283
  %285 = vmatmul.f32.gmra.mxu0 %v92
  %v286 = vpop.f32.mrf.mxu0
  %v287 = vadd.f32 0.0, %v286
  %288 = vmatmul.f32.gmra.mxu0 %v95
  %v289 = vpop.f32.mrf.mxu0
  %v290 = vadd.f32 0.0, %v289
  %291 = vmatmul.f32.gmra.mxu0 %v98
  %v292 = vpop.f32.mrf.mxu0
  %v293 = vadd.f32 0.0, %v292
  %294 = vdwg.mxu0
  %295 = vmatpush.msra.mxu0 0.0
  %296 = vmatpush.msra.mxu0 0.0
  %297 = vmatpush.msra.mxu0 0.0
  %298 = vmatpush.msra.mxu0 0.0
  %299 = vmatpush.msra.mxu0 0.0
  %300 = vmatpush.msra.mxu0 0.0
  %301 = vmatpush.msra.mxu0 0.0
  %302 = vmatpush.msra.mxu0 0.0
  %303 = vmatpush.msra.mxu0 0.0
  %304 = vmatpush.msra.mxu0 0.0
  %305 = vmatpush.msra.mxu0 0.0
  %306 = vmatpush.msra.mxu0 0.0
  %307 = vmatpush.msra.mxu0 %v50
  %308 = vmatpush.msra.mxu0 %v46
  %309 = vmatpush.msra.mxu0 %v42
  %310 = vmatpush.msra.mxu0 %v38
  %311 = vmatmul.f32.gmra.mxu0 %v53
  %v312 = vpop.f32.mrf.mxu0
  %v313 = vadd.f32 0.0, %v312
  %314 = vmatmul.f32.gmra.mxu0 %v56
  %v315 = vpop.f32.mrf.mxu0
  %v316 = vadd.f32 0.0, %v315
  %317 = vmatmul.f32.gmra.mxu0 %v59
  %v318 = vpop.f32.mrf.mxu0
  %v319 = vadd.f32 0.0, %v318
  %320 = vmatmul.f32.gmra.mxu0 %v62
  %v321 = vpop.f32.mrf.mxu0
  %v322 = vadd.f32 0.0, %v321
  %323 = vmatmul.f32.gmra.mxu0 %v65
  %v324 = vpop.f32.mrf.mxu0
  %v325 = vadd.f32 0.0, %v324
  %326 = vmatmul.f32.gmra.mxu0 %v68
  %v327 = vpop.f32.mrf.mxu0
  %v328 = vadd.f32 0.0, %v327
  %329 = vmatmul.f32.gmra.mxu0 %v71
  %v330 = vpop.f32.mrf.mxu0
  %v331 = vadd.f32 0.0, %v330
  %332 = vmatmul.f32.gmra.mxu0 %v74
  %v333 = vpop.f32.mrf.mxu0
  %v334 = vadd.f32 0.0, %v333
  %335 = vmatmul.f32.gmra.mxu0 %v77
  %v336 = vpop.f32.mrf.mxu0
  %v337 = vadd.f32 0.0, %v336
  %338 = vmatmul.f32.gmra.mxu0 %v80
  %v339 = vpop.f32.mrf.mxu0
  %v340 = vadd.f32 0.0, %v339
  %341 = vmatmul.f32.gmra.mxu0 %v83
  %v342 = vpop.f32.mrf.mxu0
  %v343 = vadd.f32 0.0, %v342
  %344 = vmatmul.f32.gmra.mxu0 %v86
  %v345 = vpop.f32.mrf.mxu0
  %v346 = vadd.f32 0.0, %v345
  %347 = vmatmul.f32.gmra.mxu0 %v89
  %v348 = vpop.f32.mrf.mxu0
  %v349 = vadd.f32 0.0, %v348
  %350 = vmatmul.f32.gmra.mxu0 %v92
  %v351 = vpop.f32.mrf.mxu0
  %v352 = vadd.f32 0.0, %v351
  %353 = vmatmul.f32.gmra.mxu0 %v95
  %v354 = vpop.f32.mrf.mxu0
  %v355 = vadd.f32 0.0, %v354
  %356 = vmatmul.f32.gmra.mxu0 %v98
  %v357 = vpop.f32.mrf.mxu0
  %v358 = vadd.f32 0.0, %v357
  %359 = vdwg.mxu0
  %v360 = vld [vmem:[%s3] sm:$0xf]
  %v362 = vperm.slane %v360, 0
  %v363 = vperm.slane %v360, 1
  %v364 = vperm.slane %v360, 2
  %v365 = vperm.slane %v360, 3
  %v370 = vsub.f32 %v362, %v118
  %v371 = vsub.f32 %v363, %v183
  %v372 = vsub.f32 %v364, %v248
  %v373 = vsub.f32 %v365, %v313
  %v374 = vsub.f32 %v362, %v121
  %v375 = vsub.f32 %v363, %v186
  %v376 = vsub.f32 %v364, %v251
  %v377 = vsub.f32 %v365, %v316
  %v378 = vsub.f32 %v362, %v124
  %v379 = vsub.f32 %v363, %v189
  %v380 = vsub.f32 %v364, %v254
  %v381 = vsub.f32 %v365, %v319
  %v382 = vsub.f32 %v362, %v127
  %v383 = vsub.f32 %v363, %v192
  %v384 = vsub.f32 %v364, %v257
  %v385 = vsub.f32 %v365, %v322
  %v386 = vsub.f32 %v362, %v130
  %v387 = vsub.f32 %v363, %v195
  %v388 = vsub.f32 %v364, %v260
  %v389 = vsub.f32 %v365, %v325
  %v390 = vsub.f32 %v362, %v133
  %v391 = vsub.f32 %v363, %v198
  %v392 = vsub.f32 %v364, %v263
  %v393 = vsub.f32 %v365, %v328
  %v394 = vsub.f32 %v362, %v136
  %v395 = vsub.f32 %v363, %v201
  %v396 = vsub.f32 %v364, %v266
  %v397 = vsub.f32 %v365, %v331
  %v398 = vsub.f32 %v362, %v139
  %v399 = vsub.f32 %v363, %v204
  %v400 = vsub.f32 %v364, %v269
  %v401 = vsub.f32 %v365, %v334
  %v402 = vsub.f32 %v362, %v142
  %v403 = vsub.f32 %v363, %v207
  %v404 = vsub.f32 %v364, %v272
  %v405 = vsub.f32 %v365, %v337
  %v406 = vsub.f32 %v362, %v145
  %v407 = vsub.f32 %v363, %v210
  %v408 = vsub.f32 %v364, %v275
  %v409 = vsub.f32 %v365, %v340
  %v410 = vsub.f32 %v362, %v148
  %v411 = vsub.f32 %v363, %v213
  %v412 = vsub.f32 %v364, %v278
  %v413 = vsub.f32 %v365, %v343
  %v414 = vsub.f32 %v362, %v151
  %v415 = vsub.f32 %v363, %v216
  %v416 = vsub.f32 %v364, %v281
  %v417 = vsub.f32 %v365, %v346
  %v418 = vsub.f32 %v362, %v154
  %v419 = vsub.f32 %v363, %v219
  %v420 = vsub.f32 %v364, %v284
  %v421 = vsub.f32 %v365, %v349
  %v422 = vsub.f32 %v362, %v157
  %v423 = vsub.f32 %v363, %v222
  %v424 = vsub.f32 %v364, %v287
  %v425 = vsub.f32 %v365, %v352
  %v426 = vsub.f32 %v362, %v160
  %v427 = vsub.f32 %v363, %v225
  %v428 = vsub.f32 %v364, %v290
  %v429 = vsub.f32 %v365, %v355
  %v430 = vsub.f32 %v362, %v163
  %v431 = vsub.f32 %v363, %v228
  %v432 = vsub.f32 %v364, %v293
  %v433 = vsub.f32 %v365, %v358
  %v434 = vlaneseq
  %v435 = vand.u32 %v434, 127
  %v436 = vadd.s32 %v435, 128
  %vm437 = vcmp.le.f32.partialorder %v370, %v371
  %v438 = vsel %vm437, %v370, %v371
  %v439 = vsel %vm437, %v435, %v436
  %v440 = vadd.s32 %v435, 256
  %vm441 = vcmp.le.f32.partialorder %v438, %v372
  %v442 = vsel %vm441, %v438, %v372
  %v443 = vsel %vm441, %v439, %v440
  %v444 = vadd.s32 %v435, 384
  %vm445 = vcmp.le.f32.partialorder %v442, %v373
  %v446 = vsel %vm445, %v442, %v373
  %v447 = vsel %vm445, %v443, %v444
  %448 = vmin.index.xlane.f32.xlu0 %v446
  %v449 = vpop.xlane.xlu0 %448
  %450 = vset.pattern.permute.xlu0 %v449
  %451 = vperm.xlu0 %450, %v447
  %v452 = vpop.permute.xlu0 %451
  %vm453 = vcmp.le.f32.partialorder %v374, %v375
  %v454 = vsel %vm453, %v374, %v375
  %v455 = vsel %vm453, %v435, %v436
  %vm456 = vcmp.le.f32.partialorder %v454, %v376
  %v457 = vsel %vm456, %v454, %v376
  %v458 = vsel %vm456, %v455, %v440
  %vm459 = vcmp.le.f32.partialorder %v457, %v377
  %v460 = vsel %vm459, %v457, %v377
  %v461 = vsel %vm459, %v458, %v444
  %462 = vmin.index.xlane.f32.xlu0 %v460
  %v463 = vpop.xlane.xlu0 %462
  %464 = vset.pattern.permute.xlu0 %v463
  %465 = vperm.xlu0 %464, %v461
  %v466 = vpop.permute.xlu0 %465
  %vm467 = vcmp.le.f32.partialorder %v378, %v379
  %v468 = vsel %vm467, %v378, %v379
  %v469 = vsel %vm467, %v435, %v436
  %vm470 = vcmp.le.f32.partialorder %v468, %v380
  %v471 = vsel %vm470, %v468, %v380
  %v472 = vsel %vm470, %v469, %v440
  %vm473 = vcmp.le.f32.partialorder %v471, %v381
  %v474 = vsel %vm473, %v471, %v381
  %v475 = vsel %vm473, %v472, %v444
  %476 = vmin.index.xlane.f32.xlu0 %v474
  %v477 = vpop.xlane.xlu0 %476
  %478 = vset.pattern.permute.xlu0 %v477
  %479 = vperm.xlu0 %478, %v475
  %v480 = vpop.permute.xlu0 %479
  %vm481 = vcmp.le.f32.partialorder %v382, %v383
  %v482 = vsel %vm481, %v382, %v383
  %v483 = vsel %vm481, %v435, %v436
  %vm484 = vcmp.le.f32.partialorder %v482, %v384
  %v485 = vsel %vm484, %v482, %v384
  %v486 = vsel %vm484, %v483, %v440
  %vm487 = vcmp.le.f32.partialorder %v485, %v385
  %v488 = vsel %vm487, %v485, %v385
  %v489 = vsel %vm487, %v486, %v444
  %490 = vmin.index.xlane.f32.xlu0 %v488
  %v491 = vpop.xlane.xlu0 %490
  %492 = vset.pattern.permute.xlu0 %v491
  %493 = vperm.xlu0 %492, %v489
  %v494 = vpop.permute.xlu0 %493
  %vm495 = vcmp.le.f32.partialorder %v386, %v387
  %v496 = vsel %vm495, %v386, %v387
  %v497 = vsel %vm495, %v435, %v436
  %vm498 = vcmp.le.f32.partialorder %v496, %v388
  %v499 = vsel %vm498, %v496, %v388
  %v500 = vsel %vm498, %v497, %v440
  %vm501 = vcmp.le.f32.partialorder %v499, %v389
  %v502 = vsel %vm501, %v499, %v389
  %v503 = vsel %vm501, %v500, %v444
  %504 = vmin.index.xlane.f32.xlu0 %v502
  %v505 = vpop.xlane.xlu0 %504
  %506 = vset.pattern.permute.xlu0 %v505
  %507 = vperm.xlu0 %506, %v503
  %v508 = vpop.permute.xlu0 %507
  %vm509 = vcmp.le.f32.partialorder %v390, %v391
  %v510 = vsel %vm509, %v390, %v391
  %v511 = vsel %vm509, %v435, %v436
  %vm512 = vcmp.le.f32.partialorder %v510, %v392
  %v513 = vsel %vm512, %v510, %v392
  %v514 = vsel %vm512, %v511, %v440
  %vm515 = vcmp.le.f32.partialorder %v513, %v393
  %v516 = vsel %vm515, %v513, %v393
  %v517 = vsel %vm515, %v514, %v444
  %518 = vmin.index.xlane.f32.xlu0 %v516
  %v519 = vpop.xlane.xlu0 %518
  %520 = vset.pattern.permute.xlu0 %v519
  %521 = vperm.xlu0 %520, %v517
  %v522 = vpop.permute.xlu0 %521
  %vm523 = vcmp.le.f32.partialorder %v394, %v395
  %v524 = vsel %vm523, %v394, %v395
  %v525 = vsel %vm523, %v435, %v436
  %vm526 = vcmp.le.f32.partialorder %v524, %v396
  %v527 = vsel %vm526, %v524, %v396
  %v528 = vsel %vm526, %v525, %v440
  %vm529 = vcmp.le.f32.partialorder %v527, %v397
  %v530 = vsel %vm529, %v527, %v397
  %v531 = vsel %vm529, %v528, %v444
  %532 = vmin.index.xlane.f32.xlu0 %v530
  %v533 = vpop.xlane.xlu0 %532
  %534 = vset.pattern.permute.xlu0 %v533
  %535 = vperm.xlu0 %534, %v531
  %v536 = vpop.permute.xlu0 %535
  %vm537 = vcmp.le.f32.partialorder %v398, %v399
  %v538 = vsel %vm537, %v398, %v399
  %v539 = vsel %vm537, %v435, %v436
  %vm540 = vcmp.le.f32.partialorder %v538, %v400
  %v541 = vsel %vm540, %v538, %v400
  %v542 = vsel %vm540, %v539, %v440
  %vm543 = vcmp.le.f32.partialorder %v541, %v401
  %v544 = vsel %vm543, %v541, %v401
  %v545 = vsel %vm543, %v542, %v444
  %546 = vmin.index.xlane.f32.xlu0 %v544
  %v547 = vpop.xlane.xlu0 %546
  %548 = vset.pattern.permute.xlu0 %v547
  %549 = vperm.xlu0 %548, %v545
  %v550 = vpop.permute.xlu0 %549
  %vm551 = vcmp.le.f32.partialorder %v402, %v403
  %v552 = vsel %vm551, %v402, %v403
  %v553 = vsel %vm551, %v435, %v436
  %vm554 = vcmp.le.f32.partialorder %v552, %v404
  %v555 = vsel %vm554, %v552, %v404
  %v556 = vsel %vm554, %v553, %v440
  %vm557 = vcmp.le.f32.partialorder %v555, %v405
  %v558 = vsel %vm557, %v555, %v405
  %v559 = vsel %vm557, %v556, %v444
  %560 = vmin.index.xlane.f32.xlu0 %v558
  %v561 = vpop.xlane.xlu0 %560
  %562 = vset.pattern.permute.xlu0 %v561
  %563 = vperm.xlu0 %562, %v559
  %v564 = vpop.permute.xlu0 %563
  %vm565 = vcmp.le.f32.partialorder %v406, %v407
  %v566 = vsel %vm565, %v406, %v407
  %v567 = vsel %vm565, %v435, %v436
  %vm568 = vcmp.le.f32.partialorder %v566, %v408
  %v569 = vsel %vm568, %v566, %v408
  %v570 = vsel %vm568, %v567, %v440
  %vm571 = vcmp.le.f32.partialorder %v569, %v409
  %v572 = vsel %vm571, %v569, %v409
  %v573 = vsel %vm571, %v570, %v444
  %574 = vmin.index.xlane.f32.xlu0 %v572
  %v575 = vpop.xlane.xlu0 %574
  %576 = vset.pattern.permute.xlu0 %v575
  %577 = vperm.xlu0 %576, %v573
  %v578 = vpop.permute.xlu0 %577
  %vm579 = vcmp.le.f32.partialorder %v410, %v411
  %v580 = vsel %vm579, %v410, %v411
  %v581 = vsel %vm579, %v435, %v436
  %vm582 = vcmp.le.f32.partialorder %v580, %v412
  %v583 = vsel %vm582, %v580, %v412
  %v584 = vsel %vm582, %v581, %v440
  %vm585 = vcmp.le.f32.partialorder %v583, %v413
  %v586 = vsel %vm585, %v583, %v413
  %v587 = vsel %vm585, %v584, %v444
  %588 = vmin.index.xlane.f32.xlu0 %v586
  %v589 = vpop.xlane.xlu0 %588
  %590 = vset.pattern.permute.xlu0 %v589
  %591 = vperm.xlu0 %590, %v587
  %v592 = vpop.permute.xlu0 %591
  %vm593 = vcmp.le.f32.partialorder %v414, %v415
  %v594 = vsel %vm593, %v414, %v415
  %v595 = vsel %vm593, %v435, %v436
  %vm596 = vcmp.le.f32.partialorder %v594, %v416
  %v597 = vsel %vm596, %v594, %v416
  %v598 = vsel %vm596, %v595, %v440
  %vm599 = vcmp.le.f32.partialorder %v597, %v417
  %v600 = vsel %vm599, %v597, %v417
  %v601 = vsel %vm599, %v598, %v444
  %602 = vmin.index.xlane.f32.xlu0 %v600
  %v603 = vpop.xlane.xlu0 %602
  %604 = vset.pattern.permute.xlu0 %v603
  %605 = vperm.xlu0 %604, %v601
  %v606 = vpop.permute.xlu0 %605
  %vm607 = vcmp.le.f32.partialorder %v418, %v419
  %v608 = vsel %vm607, %v418, %v419
  %v609 = vsel %vm607, %v435, %v436
  %vm610 = vcmp.le.f32.partialorder %v608, %v420
  %v611 = vsel %vm610, %v608, %v420
  %v612 = vsel %vm610, %v609, %v440
  %vm613 = vcmp.le.f32.partialorder %v611, %v421
  %v614 = vsel %vm613, %v611, %v421
  %v615 = vsel %vm613, %v612, %v444
  %616 = vmin.index.xlane.f32.xlu0 %v614
  %v617 = vpop.xlane.xlu0 %616
  %618 = vset.pattern.permute.xlu0 %v617
  %619 = vperm.xlu0 %618, %v615
  %v620 = vpop.permute.xlu0 %619
  %vm621 = vcmp.le.f32.partialorder %v422, %v423
  %v622 = vsel %vm621, %v422, %v423
  %v623 = vsel %vm621, %v435, %v436
  %vm624 = vcmp.le.f32.partialorder %v622, %v424
  %v625 = vsel %vm624, %v622, %v424
  %v626 = vsel %vm624, %v623, %v440
  %vm627 = vcmp.le.f32.partialorder %v625, %v425
  %v628 = vsel %vm627, %v625, %v425
  %v629 = vsel %vm627, %v626, %v444
  %630 = vmin.index.xlane.f32.xlu0 %v628
  %v631 = vpop.xlane.xlu0 %630
  %632 = vset.pattern.permute.xlu0 %v631
  %633 = vperm.xlu0 %632, %v629
  %v634 = vpop.permute.xlu0 %633
  %vm635 = vcmp.le.f32.partialorder %v426, %v427
  %v636 = vsel %vm635, %v426, %v427
  %v637 = vsel %vm635, %v435, %v436
  %vm638 = vcmp.le.f32.partialorder %v636, %v428
  %v639 = vsel %vm638, %v636, %v428
  %v640 = vsel %vm638, %v637, %v440
  %vm641 = vcmp.le.f32.partialorder %v639, %v429
  %v642 = vsel %vm641, %v639, %v429
  %v643 = vsel %vm641, %v640, %v444
  %644 = vmin.index.xlane.f32.xlu0 %v642
  %v645 = vpop.xlane.xlu0 %644
  %646 = vset.pattern.permute.xlu0 %v645
  %647 = vperm.xlu0 %646, %v643
  %v648 = vpop.permute.xlu0 %647
  %vm649 = vcmp.le.f32.partialorder %v430, %v431
  %v650 = vsel %vm649, %v430, %v431
  %v651 = vsel %vm649, %v435, %v436
  %vm652 = vcmp.le.f32.partialorder %v650, %v432
  %v653 = vsel %vm652, %v650, %v432
  %v654 = vsel %vm652, %v651, %v440
  %vm655 = vcmp.le.f32.partialorder %v653, %v433
  %v656 = vsel %vm655, %v653, %v433
  %v657 = vsel %vm655, %v654, %v444
  %658 = vmin.index.xlane.f32.xlu0 %v656
  %v659 = vpop.xlane.xlu0 %658
  %660 = vset.pattern.permute.xlu0 %v659
  %661 = vperm.xlu0 %660, %v657
  %v662 = vpop.permute.xlu0 %661
  %vm663 = vcmp.eq.s32.totalorder %v435, %v452
  %vm664 = vcmp.eq.s32.totalorder %v436, %v452
  %vm665 = vcmp.eq.s32.totalorder %v440, %v452
  %vm666 = vcmp.eq.s32.totalorder %v444, %v452
  %vm667 = vcmp.eq.s32.totalorder %v435, %v466
  %vm668 = vcmp.eq.s32.totalorder %v436, %v466
  %vm669 = vcmp.eq.s32.totalorder %v440, %v466
  %vm670 = vcmp.eq.s32.totalorder %v444, %v466
  %vm671 = vcmp.eq.s32.totalorder %v435, %v480
  %vm672 = vcmp.eq.s32.totalorder %v436, %v480
  %vm673 = vcmp.eq.s32.totalorder %v440, %v480
  %vm674 = vcmp.eq.s32.totalorder %v444, %v480
  %vm675 = vcmp.eq.s32.totalorder %v435, %v494
  %vm676 = vcmp.eq.s32.totalorder %v436, %v494
  %vm677 = vcmp.eq.s32.totalorder %v440, %v494
  %vm678 = vcmp.eq.s32.totalorder %v444, %v494
  %vm679 = vcmp.eq.s32.totalorder %v435, %v508
  %vm680 = vcmp.eq.s32.totalorder %v436, %v508
  %vm681 = vcmp.eq.s32.totalorder %v440, %v508
  %vm682 = vcmp.eq.s32.totalorder %v444, %v508
  %vm683 = vcmp.eq.s32.totalorder %v435, %v522
  %vm684 = vcmp.eq.s32.totalorder %v436, %v522
  %vm685 = vcmp.eq.s32.totalorder %v440, %v522
  %vm686 = vcmp.eq.s32.totalorder %v444, %v522
  %vm687 = vcmp.eq.s32.totalorder %v435, %v536
  %vm688 = vcmp.eq.s32.totalorder %v436, %v536
  %vm689 = vcmp.eq.s32.totalorder %v440, %v536
  %vm690 = vcmp.eq.s32.totalorder %v444, %v536
  %vm691 = vcmp.eq.s32.totalorder %v435, %v550
  %vm692 = vcmp.eq.s32.totalorder %v436, %v550
  %vm693 = vcmp.eq.s32.totalorder %v440, %v550
  %vm694 = vcmp.eq.s32.totalorder %v444, %v550
  %vm695 = vcmp.eq.s32.totalorder %v435, %v564
  %vm696 = vcmp.eq.s32.totalorder %v436, %v564
  %vm697 = vcmp.eq.s32.totalorder %v440, %v564
  %vm698 = vcmp.eq.s32.totalorder %v444, %v564
  %vm699 = vcmp.eq.s32.totalorder %v435, %v578
  %vm700 = vcmp.eq.s32.totalorder %v436, %v578
  %vm701 = vcmp.eq.s32.totalorder %v440, %v578
  %vm702 = vcmp.eq.s32.totalorder %v444, %v578
  %vm703 = vcmp.eq.s32.totalorder %v435, %v592
  %vm704 = vcmp.eq.s32.totalorder %v436, %v592
  %vm705 = vcmp.eq.s32.totalorder %v440, %v592
  %vm706 = vcmp.eq.s32.totalorder %v444, %v592
  %vm707 = vcmp.eq.s32.totalorder %v435, %v606
  %vm708 = vcmp.eq.s32.totalorder %v436, %v606
  %vm709 = vcmp.eq.s32.totalorder %v440, %v606
  %vm710 = vcmp.eq.s32.totalorder %v444, %v606
  %vm711 = vcmp.eq.s32.totalorder %v435, %v620
  %vm712 = vcmp.eq.s32.totalorder %v436, %v620
  %vm713 = vcmp.eq.s32.totalorder %v440, %v620
  %vm714 = vcmp.eq.s32.totalorder %v444, %v620
  %vm715 = vcmp.eq.s32.totalorder %v435, %v634
  %vm716 = vcmp.eq.s32.totalorder %v436, %v634
  %vm717 = vcmp.eq.s32.totalorder %v440, %v634
  %vm718 = vcmp.eq.s32.totalorder %v444, %v634
  %vm719 = vcmp.eq.s32.totalorder %v435, %v648
  %vm720 = vcmp.eq.s32.totalorder %v436, %v648
  %vm721 = vcmp.eq.s32.totalorder %v440, %v648
  %vm722 = vcmp.eq.s32.totalorder %v444, %v648
  %vm723 = vcmp.eq.s32.totalorder %v435, %v662
  %vm724 = vcmp.eq.s32.totalorder %v436, %v662
  %vm725 = vcmp.eq.s32.totalorder %v440, %v662
  %vm726 = vcmp.eq.s32.totalorder %v444, %v662
  %v727 = vsel %vm663, 1, 0
  %v728 = vsel %vm664, 1, 0
  %v729 = vsel %vm665, 1, 0
  %v730 = vsel %vm666, 1, 0
  %v731 = vsel %vm667, 1, 0
  %v732 = vsel %vm668, 1, 0
  %v733 = vsel %vm669, 1, 0
  %v734 = vsel %vm670, 1, 0
  %v735 = vsel %vm671, 1, 0
  %v736 = vsel %vm672, 1, 0
  %v737 = vsel %vm673, 1, 0
  %v738 = vsel %vm674, 1, 0
  %v739 = vsel %vm675, 1, 0
  %v740 = vsel %vm676, 1, 0
  %v741 = vsel %vm677, 1, 0
  %v742 = vsel %vm678, 1, 0
  %v743 = vsel %vm679, 1, 0
  %v744 = vsel %vm680, 1, 0
  %v745 = vsel %vm681, 1, 0
  %v746 = vsel %vm682, 1, 0
  %v747 = vsel %vm683, 1, 0
  %v748 = vsel %vm684, 1, 0
  %v749 = vsel %vm685, 1, 0
  %v750 = vsel %vm686, 1, 0
  %v751 = vsel %vm687, 1, 0
  %v752 = vsel %vm688, 1, 0
  %v753 = vsel %vm689, 1, 0
  %v754 = vsel %vm690, 1, 0
  %v755 = vsel %vm691, 1, 0
  %v756 = vsel %vm692, 1, 0
  %v757 = vsel %vm693, 1, 0
  %v758 = vsel %vm694, 1, 0
  %v759 = vsel %vm695, 1, 0
  %v760 = vsel %vm696, 1, 0
  %v761 = vsel %vm697, 1, 0
  %v762 = vsel %vm698, 1, 0
  %v763 = vsel %vm699, 1, 0
  %v764 = vsel %vm700, 1, 0
  %v765 = vsel %vm701, 1, 0
  %v766 = vsel %vm702, 1, 0
  %v767 = vsel %vm703, 1, 0
  %v768 = vsel %vm704, 1, 0
  %v769 = vsel %vm705, 1, 0
  %v770 = vsel %vm706, 1, 0
  %v771 = vsel %vm707, 1, 0
  %v772 = vsel %vm708, 1, 0
  %v773 = vsel %vm709, 1, 0
  %v774 = vsel %vm710, 1, 0
  %v775 = vsel %vm711, 1, 0
  %v776 = vsel %vm712, 1, 0
  %v777 = vsel %vm713, 1, 0
  %v778 = vsel %vm714, 1, 0
  %v779 = vsel %vm715, 1, 0
  %v780 = vsel %vm716, 1, 0
  %v781 = vsel %vm717, 1, 0
  %v782 = vsel %vm718, 1, 0
  %v783 = vsel %vm719, 1, 0
  %v784 = vsel %vm720, 1, 0
  %v785 = vsel %vm721, 1, 0
  %v786 = vsel %vm722, 1, 0
  %v787 = vsel %vm723, 1, 0
  %v788 = vsel %vm724, 1, 0
  %v789 = vsel %vm725, 1, 0
  %v790 = vsel %vm726, 1, 0
  %v791 = vcvt.s32.f32 %v727
  %v792 = vcvt.s32.f32 %v728
  %v793 = vcvt.s32.f32 %v729
  %v794 = vcvt.s32.f32 %v730
  %v795 = vcvt.s32.f32 %v731
  %v796 = vcvt.s32.f32 %v732
  %v797 = vcvt.s32.f32 %v733
  %v798 = vcvt.s32.f32 %v734
  %v799 = vcvt.s32.f32 %v735
  %v800 = vcvt.s32.f32 %v736
  %v801 = vcvt.s32.f32 %v737
  %v802 = vcvt.s32.f32 %v738
  %v803 = vcvt.s32.f32 %v739
  %v804 = vcvt.s32.f32 %v740
  %v805 = vcvt.s32.f32 %v741
  %v806 = vcvt.s32.f32 %v742
  %v807 = vcvt.s32.f32 %v743
  %v808 = vcvt.s32.f32 %v744
  %v809 = vcvt.s32.f32 %v745
  %v810 = vcvt.s32.f32 %v746
  %v811 = vcvt.s32.f32 %v747
  %v812 = vcvt.s32.f32 %v748
  %v813 = vcvt.s32.f32 %v749
  %v814 = vcvt.s32.f32 %v750
  %v815 = vcvt.s32.f32 %v751
  %v816 = vcvt.s32.f32 %v752
  %v817 = vcvt.s32.f32 %v753
  %v818 = vcvt.s32.f32 %v754
  %v819 = vcvt.s32.f32 %v755
  %v820 = vcvt.s32.f32 %v756
  %v821 = vcvt.s32.f32 %v757
  %v822 = vcvt.s32.f32 %v758
  %v823 = vcvt.s32.f32 %v759
  %v824 = vcvt.s32.f32 %v760
  %v825 = vcvt.s32.f32 %v761
  %v826 = vcvt.s32.f32 %v762
  %v827 = vcvt.s32.f32 %v763
  %v828 = vcvt.s32.f32 %v764
  %v829 = vcvt.s32.f32 %v765
  %v830 = vcvt.s32.f32 %v766
  %v831 = vcvt.s32.f32 %v767
  %v832 = vcvt.s32.f32 %v768
  %v833 = vcvt.s32.f32 %v769
  %v834 = vcvt.s32.f32 %v770
  %v835 = vcvt.s32.f32 %v771
  %v836 = vcvt.s32.f32 %v772
  %v837 = vcvt.s32.f32 %v773
  %v838 = vcvt.s32.f32 %v774
  %v839 = vcvt.s32.f32 %v775
  %v840 = vcvt.s32.f32 %v776
  %v841 = vcvt.s32.f32 %v777
  %v842 = vcvt.s32.f32 %v778
  %v843 = vcvt.s32.f32 %v779
  %v844 = vcvt.s32.f32 %v780
  %v845 = vcvt.s32.f32 %v781
  %v846 = vcvt.s32.f32 %v782
  %v847 = vcvt.s32.f32 %v783
  %v848 = vcvt.s32.f32 %v784
  %v849 = vcvt.s32.f32 %v785
  %v850 = vcvt.s32.f32 %v786
  %v851 = vcvt.s32.f32 %v787
  %v852 = vcvt.s32.f32 %v788
  %v853 = vcvt.s32.f32 %v789
  %v854 = vcvt.s32.f32 %v790
  %v855 = vld [vmem:[%s1] sm:$0xff]
  %v856 = vld [vmem:[%s1 + $0x8] sm:$0xff]
  %v857 = vld [vmem:[%s1 + $0x10] sm:$0xff]
  %v858 = vld [vmem:[%s1 + $0x18] sm:$0xff]
  %v859 = vld [vmem:[%s1 + $0x20] sm:$0xff]
  %v860 = vld [vmem:[%s1 + $0x28] sm:$0xff]
  %v861 = vld [vmem:[%s1 + $0x30] sm:$0xff]
  %v862 = vld [vmem:[%s1 + $0x38] sm:$0xff]
  %v863 = vld [vmem:[%s1 + $0x40] sm:$0xff]
  %v864 = vld [vmem:[%s1 + $0x48] sm:$0xff]
  %v865 = vld [vmem:[%s1 + $0x50] sm:$0xff]
  %v866 = vld [vmem:[%s1 + $0x58] sm:$0xff]
  %v867 = vld [vmem:[%s1 + $0x60] sm:$0xff]
  %v868 = vld [vmem:[%s1 + $0x68] sm:$0xff]
  %v869 = vld [vmem:[%s1 + $0x70] sm:$0xff]
  %v870 = vld [vmem:[%s1 + $0x78] sm:$0xff]
  %v871 = vld [vmem:[%s1 + $0x80] sm:$0xff]
  %v872 = vld [vmem:[%s1 + $0x88] sm:$0xff]
  %v873 = vld [vmem:[%s1 + $0x90] sm:$0xff]
  %v874 = vld [vmem:[%s1 + $0x98] sm:$0xff]
  %v875 = vld [vmem:[%s1 + $0xa0] sm:$0xff]
  %v876 = vld [vmem:[%s1 + $0xa8] sm:$0xff]
  %v877 = vld [vmem:[%s1 + $0xb0] sm:$0xff]
  %v878 = vld [vmem:[%s1 + $0xb8] sm:$0xff]
  %v879 = vld [vmem:[%s1 + $0xc0] sm:$0xff]
  %v880 = vld [vmem:[%s1 + $0xc8] sm:$0xff]
  %v881 = vld [vmem:[%s1 + $0xd0] sm:$0xff]
  %v882 = vld [vmem:[%s1 + $0xd8] sm:$0xff]
  %v883 = vld [vmem:[%s1 + $0xe0] sm:$0xff]
  %v884 = vld [vmem:[%s1 + $0xe8] sm:$0xff]
  %v885 = vld [vmem:[%s1 + $0xf0] sm:$0xff]
  %v886 = vld [vmem:[%s1 + $0xf8] sm:$0xff]
  %v887 = vld [vmem:[%s1 + $0x100] sm:$0xff]
  %v888 = vld [vmem:[%s1 + $0x108] sm:$0xff]
  %v889 = vld [vmem:[%s1 + $0x110] sm:$0xff]
  %v890 = vld [vmem:[%s1 + $0x118] sm:$0xff]
  %v891 = vld [vmem:[%s1 + $0x120] sm:$0xff]
  %v892 = vld [vmem:[%s1 + $0x128] sm:$0xff]
  %v893 = vld [vmem:[%s1 + $0x130] sm:$0xff]
  %v894 = vld [vmem:[%s1 + $0x138] sm:$0xff]
  %v895 = vld [vmem:[%s1 + $0x140] sm:$0xff]
  %v896 = vld [vmem:[%s1 + $0x148] sm:$0xff]
  %v897 = vld [vmem:[%s1 + $0x150] sm:$0xff]
  %v898 = vld [vmem:[%s1 + $0x158] sm:$0xff]
  %v899 = vld [vmem:[%s1 + $0x160] sm:$0xff]
  %v900 = vld [vmem:[%s1 + $0x168] sm:$0xff]
  %v901 = vld [vmem:[%s1 + $0x170] sm:$0xff]
  %v902 = vld [vmem:[%s1 + $0x178] sm:$0xff]
  %v903 = vld [vmem:[%s1 + $0x180] sm:$0xff]
  %v904 = vld [vmem:[%s1 + $0x188] sm:$0xff]
  %v905 = vld [vmem:[%s1 + $0x190] sm:$0xff]
  %v906 = vld [vmem:[%s1 + $0x198] sm:$0xff]
  %v907 = vld [vmem:[%s1 + $0x1a0] sm:$0xff]
  %v908 = vld [vmem:[%s1 + $0x1a8] sm:$0xff]
  %v909 = vld [vmem:[%s1 + $0x1b0] sm:$0xff]
  %v910 = vld [vmem:[%s1 + $0x1b8] sm:$0xff]
  %v911 = vld [vmem:[%s1 + $0x1c0] sm:$0xff]
  %v912 = vld [vmem:[%s1 + $0x1c8] sm:$0xff]
  %v913 = vld [vmem:[%s1 + $0x1d0] sm:$0xff]
  %v914 = vld [vmem:[%s1 + $0x1d8] sm:$0xff]
  %v915 = vld [vmem:[%s1 + $0x1e0] sm:$0xff]
  %v916 = vld [vmem:[%s1 + $0x1e8] sm:$0xff]
  %v917 = vld [vmem:[%s1 + $0x1f0] sm:$0xff]
  %v918 = vld [vmem:[%s1 + $0x1f8] sm:$0xff]
  %919 = vmatpush.msra.mxu0 %v870
  %920 = vmatpush.msra.mxu0 %v869
  %921 = vmatpush.msra.mxu0 %v868
  %922 = vmatpush.msra.mxu0 %v867
  %923 = vmatpush.msra.mxu0 %v866
  %924 = vmatpush.msra.mxu0 %v865
  %925 = vmatpush.msra.mxu0 %v864
  %926 = vmatpush.msra.mxu0 %v863
  %927 = vmatpush.msra.mxu0 %v862
  %928 = vmatpush.msra.mxu0 %v861
  %929 = vmatpush.msra.mxu0 %v860
  %930 = vmatpush.msra.mxu0 %v859
  %931 = vmatpush.msra.mxu0 %v858
  %932 = vmatpush.msra.mxu0 %v857
  %933 = vmatpush.msra.mxu0 %v856
  %934 = vmatpush.msra.mxu0 %v855
  %935 = vmatmul.f32.gmra.mxu0 %v791
  %v936 = vpop.f32.mrf.mxu0
  %v937 = vadd.f32 0.0, %v936
  %938 = vmatmul.f32.gmra.mxu0 %v795
  %v939 = vpop.f32.mrf.mxu0
  %v940 = vadd.f32 0.0, %v939
  %941 = vmatmul.f32.gmra.mxu0 %v799
  %v942 = vpop.f32.mrf.mxu0
  %v943 = vadd.f32 0.0, %v942
  %944 = vmatmul.f32.gmra.mxu0 %v803
  %v945 = vpop.f32.mrf.mxu0
  %v946 = vadd.f32 0.0, %v945
  %947 = vmatmul.f32.gmra.mxu0 %v807
  %v948 = vpop.f32.mrf.mxu0
  %v949 = vadd.f32 0.0, %v948
  %950 = vmatmul.f32.gmra.mxu0 %v811
  %v951 = vpop.f32.mrf.mxu0
  %v952 = vadd.f32 0.0, %v951
  %953 = vmatmul.f32.gmra.mxu0 %v815
  %v954 = vpop.f32.mrf.mxu0
  %v955 = vadd.f32 0.0, %v954
  %956 = vmatmul.f32.gmra.mxu0 %v819
  %v957 = vpop.f32.mrf.mxu0
  %v958 = vadd.f32 0.0, %v957
  %959 = vmatmul.f32.gmra.mxu0 %v823
  %v960 = vpop.f32.mrf.mxu0
  %v961 = vadd.f32 0.0, %v960
  %962 = vmatmul.f32.gmra.mxu0 %v827
  %v963 = vpop.f32.mrf.mxu0
  %v964 = vadd.f32 0.0, %v963
  %965 = vmatmul.f32.gmra.mxu0 %v831
  %v966 = vpop.f32.mrf.mxu0
  %v967 = vadd.f32 0.0, %v966
  %968 = vmatmul.f32.gmra.mxu0 %v835
  %v969 = vpop.f32.mrf.mxu0
  %v970 = vadd.f32 0.0, %v969
  %971 = vmatmul.f32.gmra.mxu0 %v839
  %v972 = vpop.f32.mrf.mxu0
  %v973 = vadd.f32 0.0, %v972
  %974 = vmatmul.f32.gmra.mxu0 %v843
  %v975 = vpop.f32.mrf.mxu0
  %v976 = vadd.f32 0.0, %v975
  %977 = vmatmul.f32.gmra.mxu0 %v847
  %v978 = vpop.f32.mrf.mxu0
  %v979 = vadd.f32 0.0, %v978
  %980 = vmatmul.f32.gmra.mxu0 %v851
  %v981 = vpop.f32.mrf.mxu0
  %v982 = vadd.f32 0.0, %v981
  %983 = vdwg.mxu0
  %984 = vmatpush.msra.mxu0 %v886
  %985 = vmatpush.msra.mxu0 %v885
  %986 = vmatpush.msra.mxu0 %v884
  %987 = vmatpush.msra.mxu0 %v883
  %988 = vmatpush.msra.mxu0 %v882
  %989 = vmatpush.msra.mxu0 %v881
  %990 = vmatpush.msra.mxu0 %v880
  %991 = vmatpush.msra.mxu0 %v879
  %992 = vmatpush.msra.mxu0 %v878
  %993 = vmatpush.msra.mxu0 %v877
  %994 = vmatpush.msra.mxu0 %v876
  %995 = vmatpush.msra.mxu0 %v875
  %996 = vmatpush.msra.mxu0 %v874
  %997 = vmatpush.msra.mxu0 %v873
  %998 = vmatpush.msra.mxu0 %v872
  %999 = vmatpush.msra.mxu0 %v871
  %1000 = vmatmul.f32.gmra.mxu0 %v792
  %v1001 = vpop.f32.mrf.mxu0
  %v1002 = vadd.f32 %v937, %v1001
  %1003 = vmatmul.f32.gmra.mxu0 %v796
  %v1004 = vpop.f32.mrf.mxu0
  %v1005 = vadd.f32 %v940, %v1004
  %1006 = vmatmul.f32.gmra.mxu0 %v800
  %v1007 = vpop.f32.mrf.mxu0
  %v1008 = vadd.f32 %v943, %v1007
  %1009 = vmatmul.f32.gmra.mxu0 %v804
  %v1010 = vpop.f32.mrf.mxu0
  %v1011 = vadd.f32 %v946, %v1010
  %1012 = vmatmul.f32.gmra.mxu0 %v808
  %v1013 = vpop.f32.mrf.mxu0
  %v1014 = vadd.f32 %v949, %v1013
  %1015 = vmatmul.f32.gmra.mxu0 %v812
  %v1016 = vpop.f32.mrf.mxu0
  %v1017 = vadd.f32 %v952, %v1016
  %1018 = vmatmul.f32.gmra.mxu0 %v816
  %v1019 = vpop.f32.mrf.mxu0
  %v1020 = vadd.f32 %v955, %v1019
  %1021 = vmatmul.f32.gmra.mxu0 %v820
  %v1022 = vpop.f32.mrf.mxu0
  %v1023 = vadd.f32 %v958, %v1022
  %1024 = vmatmul.f32.gmra.mxu0 %v824
  %v1025 = vpop.f32.mrf.mxu0
  %v1026 = vadd.f32 %v961, %v1025
  %1027 = vmatmul.f32.gmra.mxu0 %v828
  %v1028 = vpop.f32.mrf.mxu0
  %v1029 = vadd.f32 %v964, %v1028
  %1030 = vmatmul.f32.gmra.mxu0 %v832
  %v1031 = vpop.f32.mrf.mxu0
  %v1032 = vadd.f32 %v967, %v1031
  %1033 = vmatmul.f32.gmra.mxu0 %v836
  %v1034 = vpop.f32.mrf.mxu0
  %v1035 = vadd.f32 %v970, %v1034
  %1036 = vmatmul.f32.gmra.mxu0 %v840
  %v1037 = vpop.f32.mrf.mxu0
  %v1038 = vadd.f32 %v973, %v1037
  %1039 = vmatmul.f32.gmra.mxu0 %v844
  %v1040 = vpop.f32.mrf.mxu0
  %v1041 = vadd.f32 %v976, %v1040
  %1042 = vmatmul.f32.gmra.mxu0 %v848
  %v1043 = vpop.f32.mrf.mxu0
  %v1044 = vadd.f32 %v979, %v1043
  %1045 = vmatmul.f32.gmra.mxu0 %v852
  %v1046 = vpop.f32.mrf.mxu0
  %v1047 = vadd.f32 %v982, %v1046
  %1048 = vdwg.mxu0
  %1049 = vmatpush.msra.mxu0 %v902
  %1050 = vmatpush.msra.mxu0 %v901
  %1051 = vmatpush.msra.mxu0 %v900
  %1052 = vmatpush.msra.mxu0 %v899
  %1053 = vmatpush.msra.mxu0 %v898
  %1054 = vmatpush.msra.mxu0 %v897
  %1055 = vmatpush.msra.mxu0 %v896
  %1056 = vmatpush.msra.mxu0 %v895
  %1057 = vmatpush.msra.mxu0 %v894
  %1058 = vmatpush.msra.mxu0 %v893
  %1059 = vmatpush.msra.mxu0 %v892
  %1060 = vmatpush.msra.mxu0 %v891
  %1061 = vmatpush.msra.mxu0 %v890
  %1062 = vmatpush.msra.mxu0 %v889
  %1063 = vmatpush.msra.mxu0 %v888
  %1064 = vmatpush.msra.mxu0 %v887
  %1065 = vmatmul.f32.gmra.mxu0 %v793
  %v1066 = vpop.f32.mrf.mxu0
  %v1067 = vadd.f32 %v1002, %v1066
  %1068 = vmatmul.f32.gmra.mxu0 %v797
  %v1069 = vpop.f32.mrf.mxu0
  %v1070 = vadd.f32 %v1005, %v1069
  %1071 = vmatmul.f32.gmra.mxu0 %v801
  %v1072 = vpop.f32.mrf.mxu0
  %v1073 = vadd.f32 %v1008, %v1072
  %1074 = vmatmul.f32.gmra.mxu0 %v805
  %v1075 = vpop.f32.mrf.mxu0
  %v1076 = vadd.f32 %v1011, %v1075
  %1077 = vmatmul.f32.gmra.mxu0 %v809
  %v1078 = vpop.f32.mrf.mxu0
  %v1079 = vadd.f32 %v1014, %v1078
  %1080 = vmatmul.f32.gmra.mxu0 %v813
  %v1081 = vpop.f32.mrf.mxu0
  %v1082 = vadd.f32 %v1017, %v1081
  %1083 = vmatmul.f32.gmra.mxu0 %v817
  %v1084 = vpop.f32.mrf.mxu0
  %v1085 = vadd.f32 %v1020, %v1084
  %1086 = vmatmul.f32.gmra.mxu0 %v821
  %v1087 = vpop.f32.mrf.mxu0
  %v1088 = vadd.f32 %v1023, %v1087
  %1089 = vmatmul.f32.gmra.mxu0 %v825
  %v1090 = vpop.f32.mrf.mxu0
  %v1091 = vadd.f32 %v1026, %v1090
  %1092 = vmatmul.f32.gmra.mxu0 %v829
  %v1093 = vpop.f32.mrf.mxu0
  %v1094 = vadd.f32 %v1029, %v1093
  %1095 = vmatmul.f32.gmra.mxu0 %v833
  %v1096 = vpop.f32.mrf.mxu0
  %v1097 = vadd.f32 %v1032, %v1096
  %1098 = vmatmul.f32.gmra.mxu0 %v837
  %v1099 = vpop.f32.mrf.mxu0
  %v1100 = vadd.f32 %v1035, %v1099
  %1101 = vmatmul.f32.gmra.mxu0 %v841
  %v1102 = vpop.f32.mrf.mxu0
  %v1103 = vadd.f32 %v1038, %v1102
  %1104 = vmatmul.f32.gmra.mxu0 %v845
  %v1105 = vpop.f32.mrf.mxu0
  %v1106 = vadd.f32 %v1041, %v1105
  %1107 = vmatmul.f32.gmra.mxu0 %v849
  %v1108 = vpop.f32.mrf.mxu0
  %v1109 = vadd.f32 %v1044, %v1108
  %1110 = vmatmul.f32.gmra.mxu0 %v853
  %v1111 = vpop.f32.mrf.mxu0
  %v1112 = vadd.f32 %v1047, %v1111
  %1113 = vdwg.mxu0
  %1114 = vmatpush.msra.mxu0 %v918
  %1115 = vmatpush.msra.mxu0 %v917
  %1116 = vmatpush.msra.mxu0 %v916
  %1117 = vmatpush.msra.mxu0 %v915
  %1118 = vmatpush.msra.mxu0 %v914
  %1119 = vmatpush.msra.mxu0 %v913
  %1120 = vmatpush.msra.mxu0 %v912
  %1121 = vmatpush.msra.mxu0 %v911
  %1122 = vmatpush.msra.mxu0 %v910
  %1123 = vmatpush.msra.mxu0 %v909
  %1124 = vmatpush.msra.mxu0 %v908
  %1125 = vmatpush.msra.mxu0 %v907
  %1126 = vmatpush.msra.mxu0 %v906
  %1127 = vmatpush.msra.mxu0 %v905
  %1128 = vmatpush.msra.mxu0 %v904
  %1129 = vmatpush.msra.mxu0 %v903
  %1130 = vmatmul.f32.gmra.mxu0 %v794
  %v1131 = vpop.f32.mrf.mxu0
  %v1132 = vadd.f32 %v1067, %v1131
  %1133 = vmatmul.f32.gmra.mxu0 %v798
  %v1134 = vpop.f32.mrf.mxu0
  %v1135 = vadd.f32 %v1070, %v1134
  %1136 = vmatmul.f32.gmra.mxu0 %v802
  %v1137 = vpop.f32.mrf.mxu0
  %v1138 = vadd.f32 %v1073, %v1137
  %1139 = vmatmul.f32.gmra.mxu0 %v806
  %v1140 = vpop.f32.mrf.mxu0
  %v1141 = vadd.f32 %v1076, %v1140
  %1142 = vmatmul.f32.gmra.mxu0 %v810
  %v1143 = vpop.f32.mrf.mxu0
  %v1144 = vadd.f32 %v1079, %v1143
  %1145 = vmatmul.f32.gmra.mxu0 %v814
  %v1146 = vpop.f32.mrf.mxu0
  %v1147 = vadd.f32 %v1082, %v1146
  %1148 = vmatmul.f32.gmra.mxu0 %v818
  %v1149 = vpop.f32.mrf.mxu0
  %v1150 = vadd.f32 %v1085, %v1149
  %1151 = vmatmul.f32.gmra.mxu0 %v822
  %v1152 = vpop.f32.mrf.mxu0
  %v1153 = vadd.f32 %v1088, %v1152
  %1154 = vmatmul.f32.gmra.mxu0 %v826
  %v1155 = vpop.f32.mrf.mxu0
  %v1156 = vadd.f32 %v1091, %v1155
  %1157 = vmatmul.f32.gmra.mxu0 %v830
  %v1158 = vpop.f32.mrf.mxu0
  %v1159 = vadd.f32 %v1094, %v1158
  %1160 = vmatmul.f32.gmra.mxu0 %v834
  %v1161 = vpop.f32.mrf.mxu0
  %v1162 = vadd.f32 %v1097, %v1161
  %1163 = vmatmul.f32.gmra.mxu0 %v838
  %v1164 = vpop.f32.mrf.mxu0
  %v1165 = vadd.f32 %v1100, %v1164
  %1166 = vmatmul.f32.gmra.mxu0 %v842
  %v1167 = vpop.f32.mrf.mxu0
  %v1168 = vadd.f32 %v1103, %v1167
  %1169 = vmatmul.f32.gmra.mxu0 %v846
  %v1170 = vpop.f32.mrf.mxu0
  %v1171 = vadd.f32 %v1106, %v1170
  %1172 = vmatmul.f32.gmra.mxu0 %v850
  %v1173 = vpop.f32.mrf.mxu0
  %v1174 = vadd.f32 %v1109, %v1173
  %1175 = vmatmul.f32.gmra.mxu0 %v854
  %v1176 = vpop.f32.mrf.mxu0
  %v1177 = vadd.f32 %v1112, %v1176
  %1178 = vdwg.mxu0
  %1179 = vst.msk [vmem:[%s4] sm:$0xff] %vm51, %v1132
  %1180 = vst.msk [vmem:[%s4 + $0x8] sm:$0xff] %vm51, %v1135
  %1181 = vst.msk [vmem:[%s4 + $0x10] sm:$0xff] %vm51, %v1138
  %1182 = vst.msk [vmem:[%s4 + $0x18] sm:$0xff] %vm51, %v1141
  %1183 = vst.msk [vmem:[%s4 + $0x20] sm:$0xff] %vm51, %v1144
  %1184 = vst.msk [vmem:[%s4 + $0x28] sm:$0xff] %vm51, %v1147
  %1185 = vst.msk [vmem:[%s4 + $0x30] sm:$0xff] %vm51, %v1150
  %1186 = vst.msk [vmem:[%s4 + $0x38] sm:$0xff] %vm51, %v1153
  %1187 = vst.msk [vmem:[%s4 + $0x40] sm:$0xff] %vm51, %v1156
  %1188 = vst.msk [vmem:[%s4 + $0x48] sm:$0xff] %vm51, %v1159
  %1189 = vst.msk [vmem:[%s4 + $0x50] sm:$0xff] %vm51, %v1162
  %1190 = vst.msk [vmem:[%s4 + $0x58] sm:$0xff] %vm51, %v1165
  %1191 = vst.msk [vmem:[%s4 + $0x60] sm:$0xff] %vm51, %v1168
  %1192 = vst.msk [vmem:[%s4 + $0x68] sm:$0xff] %vm51, %v1171
  %1193 = vst.msk [vmem:[%s4 + $0x70] sm:$0xff] %vm51, %v1174
  %1194 = vst.msk [vmem:[%s4 + $0x78] sm:$0xff] %vm51, %v1177
  %s1195 = smul.u32 0, 128
  %v1196 = vstv %s1195
  %v1197 = vadd.s32 %v435, %v1196
  %vm1198 = vcmp.lt.s32.totalorder %v1197, 128
  %v1199 = vsel %vm1198, 1, 0
  %v1200 = vcvt.s32.f32 %v1199
  %1201 = vmatpush.msra.mxu0 %v851
  %1202 = vmatpush.msra.mxu0 %v847
  %1203 = vmatpush.msra.mxu0 %v843
  %1204 = vmatpush.msra.mxu0 %v839
  %1205 = vmatpush.msra.mxu0 %v835
  %1206 = vmatpush.msra.mxu0 %v831
  %1207 = vmatpush.msra.mxu0 %v827
  %1208 = vmatpush.msra.mxu0 %v823
  %1209 = vmatpush.msra.mxu0 %v819
  %1210 = vmatpush.msra.mxu0 %v815
  %1211 = vmatpush.msra.mxu0 %v811
  %1212 = vmatpush.msra.mxu0 %v807
  %1213 = vmatpush.msra.mxu0 %v803
  %1214 = vmatpush.msra.mxu0 %v799
  %1215 = vmatpush.msra.mxu0 %v795
  %1216 = vmatpush.msra.mxu0 %v791
  %1217 = vmatmul.f32.gmra.mxu0 %v1200
  %v1218 = vpop.f32.mrf.mxu0
  %v1219 = vadd.f32 0.0, %v1218
  %1220 = vdwg.mxu0
  %1221 = vmatpush.msra.mxu0 %v852
  %1222 = vmatpush.msra.mxu0 %v848
  %1223 = vmatpush.msra.mxu0 %v844
  %1224 = vmatpush.msra.mxu0 %v840
  %1225 = vmatpush.msra.mxu0 %v836
  %1226 = vmatpush.msra.mxu0 %v832
  %1227 = vmatpush.msra.mxu0 %v828
  %1228 = vmatpush.msra.mxu0 %v824
  %1229 = vmatpush.msra.mxu0 %v820
  %1230 = vmatpush.msra.mxu0 %v816
  %1231 = vmatpush.msra.mxu0 %v812
  %1232 = vmatpush.msra.mxu0 %v808
  %1233 = vmatpush.msra.mxu0 %v804
  %1234 = vmatpush.msra.mxu0 %v800
  %1235 = vmatpush.msra.mxu0 %v796
  %1236 = vmatpush.msra.mxu0 %v792
  %1237 = vmatmul.f32.gmra.mxu0 %v1200
  %v1238 = vpop.f32.mrf.mxu0
  %v1239 = vadd.f32 0.0, %v1238
  %1240 = vdwg.mxu0
  %1241 = vmatpush.msra.mxu0 %v853
  %1242 = vmatpush.msra.mxu0 %v849
  %1243 = vmatpush.msra.mxu0 %v845
  %1244 = vmatpush.msra.mxu0 %v841
  %1245 = vmatpush.msra.mxu0 %v837
  %1246 = vmatpush.msra.mxu0 %v833
  %1247 = vmatpush.msra.mxu0 %v829
  %1248 = vmatpush.msra.mxu0 %v825
  %1249 = vmatpush.msra.mxu0 %v821
  %1250 = vmatpush.msra.mxu0 %v817
  %1251 = vmatpush.msra.mxu0 %v813
  %1252 = vmatpush.msra.mxu0 %v809
  %1253 = vmatpush.msra.mxu0 %v805
  %1254 = vmatpush.msra.mxu0 %v801
  %1255 = vmatpush.msra.mxu0 %v797
  %1256 = vmatpush.msra.mxu0 %v793
  %1257 = vmatmul.f32.gmra.mxu0 %v1200
  %v1258 = vpop.f32.mrf.mxu0
  %v1259 = vadd.f32 0.0, %v1258
  %1260 = vdwg.mxu0
  %1261 = vmatpush.msra.mxu0 %v854
  %1262 = vmatpush.msra.mxu0 %v850
  %1263 = vmatpush.msra.mxu0 %v846
  %1264 = vmatpush.msra.mxu0 %v842
  %1265 = vmatpush.msra.mxu0 %v838
  %1266 = vmatpush.msra.mxu0 %v834
  %1267 = vmatpush.msra.mxu0 %v830
  %1268 = vmatpush.msra.mxu0 %v826
  %1269 = vmatpush.msra.mxu0 %v822
  %1270 = vmatpush.msra.mxu0 %v818
  %1271 = vmatpush.msra.mxu0 %v814
  %1272 = vmatpush.msra.mxu0 %v810
  %1273 = vmatpush.msra.mxu0 %v806
  %1274 = vmatpush.msra.mxu0 %v802
  %1275 = vmatpush.msra.mxu0 %v798
  %1276 = vmatpush.msra.mxu0 %v794
  %1277 = vmatmul.f32.gmra.mxu0 %v1200
  %v1278 = vpop.f32.mrf.mxu0
  %v1279 = vadd.f32 0.0, %v1278
  %1280 = vdwg.mxu0
  %v1285 = vrot.slane %v1239, 7
  %v1286 = vrot.slane %v1259, 6
  %v1287 = vrot.slane %v1279, 5
  %vm1288 = vcmask 1040384
  %v1289 = vsel %vm1288, %v1219, %v1285
  %vm1290 = vcmask 1042434
  %v1291 = vsel %vm1290, %v1286, %v1287
  %vm1292 = vcmask 1041408
  %v1293 = vsel %vm1292, %v1289, %v1291
  %v1295 = vlaneseq
  %vm1296 = vcmp.ge.s32.totalorder %v1295, 0
  %vm1297 = vcmp.lt.s32.totalorder %v1295, 512
  %vm1298 = vmand %vm1296, %vm1297
  %1299 = vst.msk [vmem:[%s5] sm:$0xf] %vm1298, %v1293
  // Predicated region
  $region18: #{vq_embedding_ema_forward.1} parent=0 // pred_check
    _
  $region19: #{vq_embedding_ema_forward.1} parent=0 // pred_check_branch
    %1301 = sbr.rel (0) target = $region21
  $region20: #{vq_embedding_ema_forward.1} parent=0 // pred_region
    _
  $region21: #{vq_embedding_ema_forward.1} parent=0 // pred_fallthru
    _
  // Predicated region
  $region22: #{vq_embedding_ema_forward.1} parent=0 // pred_check
    _
  $region23: #{vq_embedding_ema_forward.1} parent=0 // pred_check_branch
    %1303 = sbr.rel (0) target = $region25
  $region24: #{vq_embedding_ema_forward.1} parent=0 // pred_region
    _
  $region25: #{vq_embedding_ema_forward.1} parent=0 // pred_fallthru
    _
  // Predicated region
  $region26: #{vq_embedding_ema_forward.1} parent=0 // pred_check
    _
  $region27: #{vq_embedding_ema_forward.1} parent=0 // pred_check_branch
    %1305 = sbr.rel (0) target = $region29
  $region28: #{vq_embedding_ema_forward.1} parent=0 // pred_region
    _
  $region29: #{vq_embedding_ema_forward.1} parent=0 // pred_fallthru
    _
  // Predicated region
  $region30: #{vq_embedding_ema_forward.1} parent=0 // pred_check
    _
  $region31: #{vq_embedding_ema_forward.1} parent=0 // pred_check_branch
    %1307 = sbr.rel (0) target = $region33
  $region32: #{vq_embedding_ema_forward.1} parent=0 // pred_region
    _
  $region33: #{vq_embedding_ema_forward.1} parent=0 // pred_fallthru
    _

</llo_original>
